<compile_context>
chip_gen: v5e
topology: v5e:2x2
jax: 0.10.0
libtpu: 0.0.40
codegen_flags: <defaults>
</compile_context>

<pallas_src>
import jax
import jax.numpy as jnp
from jax.experimental import pallas as pl
from jax.experimental.pallas import tpu as pltpu

EPS = 1e-5
LAYERS = [32, 64, 64, 16]   # config['layers']

# Rows of the packed parameter slab (8, 128), f32.
ROW_SCALE0, ROW_SHIFT0, ROW_B1, ROW_B2, ROW_B3 = range(5)


def _round_up(n, m):
    return ((n + m - 1) // m) * m


# ----------------------------------------------------------------------------- kernel
def normal_mlp_kernel(x_ref, w1_ref, w2_ref, w3_ref, slab_ref, o_ref):
    # Activations may arrive in bf16; all math is done in f32.
    x = x_ref[...].astype(jnp.float32)
    slab = slab_ref[...]                                   # (8,128) f32, VMEM-resident

    scale0 = slab[ROW_SCALE0:ROW_SCALE0 + 1, :LAYERS[0]]   # folded pre-BN scale
    shift0 = slab[ROW_SHIFT0:ROW_SHIFT0 + 1, :LAYERS[0]]   # folded pre-BN shift
    b1 = slab[ROW_B1:ROW_B1 + 1, :LAYERS[1]]               # bias with bn1 folded in
    b2 = slab[ROW_B2:ROW_B2 + 1, :LAYERS[2]]               # bias with bn2 folded in
    b3 = slab[ROW_B3:ROW_B3 + 1, :LAYERS[3]]               # final bias

    # pre_batchnorm (folded to affine) + pre_activation
    h = jnp.maximum(x * scale0 + shift0, 0.0)
    # Linear(32->64) [+ folded BN] -> ReLU
    h = jnp.maximum(
        jnp.dot(h, w1_ref[...], preferred_element_type=jnp.float32) + b1, 0.0)
    # Linear(64->64) [+ folded BN] -> ReLU
    h = jnp.maximum(
        jnp.dot(h, w2_ref[...], preferred_element_type=jnp.float32) + b2, 0.0)
    # Final Linear(64->16), no BN / activation
    out = jnp.dot(h, w3_ref[...], preferred_element_type=jnp.float32) + b3
    o_ref[...] = out.astype(o_ref.dtype)


# ----------------------------------------------------------------------------- params
def make_params(key):
    """Deterministic parameter init matching the PyTorch module's shapes.

    Linear weights are stored transposed vs. PyTorch, i.e. (in_features, out_features),
    so the kernel computes y = x @ W + b with no in-kernel transpose.
    """
    params = {}
    keys = jax.random.split(key, 8)

    def linear(k, fan_in, fan_out):
        bound = 1.0 / jnp.sqrt(fan_in)
        kw, kb = jax.random.split(k)
        w = jax.random.uniform(kw, (fan_in, fan_out), jnp.float32, -bound, bound)
        b = jax.random.uniform(kb, (1, fan_out), jnp.float32, -bound, bound)
        return w, b

    def bn(k, feat):
        kg, kb = jax.random.split(k)
        g = 1.0 + 0.1 * jax.random.normal(kg, (1, feat), jnp.float32)
        b = 0.1 * jax.random.normal(kb, (1, feat), jnp.float32)
        m = 0.05 * jax.random.normal(jax.random.fold_in(k, 2), (1, feat), jnp.float32)
        v = 1.0 + 0.1 * jax.random.uniform(jax.random.fold_in(k, 3), (1, feat), jnp.float32)
        return g, b, m, v  # (gamma, beta, running_mean, running_var)

    params['bn0'] = bn(keys[0], LAYERS[0])
    params['w1'], params['b1'] = linear(keys[1], LAYERS[0], LAYERS[1])
    params['bn1'] = bn(keys[2], LAYERS[1])
    params['w2'], params['b2'] = linear(keys[3], LAYERS[1], LAYERS[2])
    params['bn2'] = bn(keys[4], LAYERS[2])
    params['w3'], params['b3'] = linear(keys[5], LAYERS[2], LAYERS[3])
    return params


def fold_params(params):
    """Fold eval-mode BatchNorms into the adjacent affine transforms.

    bn(x) = gamma * (x - mean) * rsqrt(var + eps) + beta
    Linear -> BN folds into W' = W * s, b' = (b - mean) * s + beta with
    s = gamma * rsqrt(var + eps). The pre-BN (before ReLU) collapses to
    x * scale0 + shift0.
    """
    g0, be0, m0, v0 = params['bn0']
    s0 = g0 * jax.lax.rsqrt(v0 + EPS)
    scale0, shift0 = s0, be0 - m0 * s0

    g1, be1, m1, v1 = params['bn1']
    s1 = g1 * jax.lax.rsqrt(v1 + EPS)
    w1 = params['w1'] * s1
    b1 = (params['b1'] - m1) * s1 + be1

    g2, be2, m2, v2 = params['bn2']
    s2 = g2 * jax.lax.rsqrt(v2 + EPS)
    w2 = params['w2'] * s2
    b2 = (params['b2'] - m2) * s2 + be2

    w3, b3 = params['w3'], params['b3']

    # Pack all remaining small vectors into one (8,128)-aligned f32 slab (single DMA).
    slab = jnp.zeros((8, 128), jnp.float32)
    slab = slab.at[ROW_SCALE0, :LAYERS[0]].set(scale0[0])
    slab = slab.at[ROW_SHIFT0, :LAYERS[0]].set(shift0[0])
    slab = slab.at[ROW_B1, :LAYERS[1]].set(b1[0])
    slab = slab.at[ROW_B2, :LAYERS[2]].set(b2[0])
    slab = slab.at[ROW_B3, :LAYERS[3]].set(b3[0])
    return {'w1': w1, 'w2': w2, 'w3': w3, 'slab': slab}


# ----------------------------------------------------------------------------- wrapper
def normal_mlp_forward(x, folded, *, tb=8192):
    """x: (B, 32) f32 or bf16. Returns (B, 16) in x.dtype."""
    B, d0 = x.shape
    assert d0 == LAYERS[0]
    out_dtype = x.dtype

    # Batch tile: cap at `tb` (>=8192 amortizes ~0.35us/step grid overhead while the
    # double-buffered activation tiles stay ~3 MiB of VMEM), keep it a multiple of 16
    # (bf16 sublane packing), and pad the batch so every grid step sees a full tile.
    TB = min(tb, _round_up(B, 16))
    padded_B = _round_up(B, TB)
    if padded_B != B:
        x = jnp.pad(x, ((0, padded_B - B), (0, 0)))
    grid = (pl.cdiv(padded_B, TB),)

    w1, w2, w3, slab = folded['w1'], folded['w2'], folded['w3'], folded['slab']
    param_bytes = sum(int(a.size) * a.dtype.itemsize for a in (w1, w2, w3, slab))
    flops = 2 * padded_B * (LAYERS[0] * LAYERS[1] + LAYERS[1] * LAYERS[2]
                            + LAYERS[2] * LAYERS[3])
    bytes_accessed = (padded_B * (LAYERS[0] + LAYERS[-1]) * x.dtype.itemsize
                      + param_bytes)

    out = pl.pallas_call(
        normal_mlp_kernel,
        out_shape=jax.ShapeDtypeStruct((padded_B, LAYERS[-1]), out_dtype),
        grid=grid,
        in_specs=[
            # activations march over the batch
            pl.BlockSpec((TB, LAYERS[0]), lambda i: (i, 0)),
            # weights + packed bias slab: constant index_map -> VMEM-resident
            pl.BlockSpec((LAYERS[0], LAYERS[1]), lambda i: (0, 0)),
            pl.BlockSpec((LAYERS[1], LAYERS[2]), lambda i: (0, 0)),
            pl.BlockSpec((LAYERS[2], LAYERS[3]), lambda i: (0, 0)),
            pl.BlockSpec((8, 128), lambda i: (0, 0)),
        ],
        out_specs=pl.BlockSpec((TB, LAYERS[-1]), lambda i: (i, 0)),
        compiler_params=pltpu.CompilerParams(
            dimension_semantics=("parallel",)),  # shard batch tiles across TCs (v7x)
        cost_estimate=pl.CostEstimate(
            flops=flops, transcendentals=0, bytes_accessed=int(bytes_accessed)),
    )(x, w1, w2, w3, slab)
    return out[:B]


# ----------------------------------------------------------------------------- main
if __name__ == "__main__":
    key = jax.random.PRNGKey(0)
    kp, kx = jax.random.split(key)
    params = make_params(kp)
    folded = fold_params(params)

    # Pure-JAX reference with the ORIGINAL (unfolded) eval-mode BN semantics.
    def ref(x, p):
        def bn(h, t):
            g, b, m, v = t
            return (h - m) * jax.lax.rsqrt(v + EPS) * g + b
        h = jnp.maximum(bn(x, p['bn0']), 0.0)
        h = jnp.maximum(bn(h @ p['w1'] + p['b1'], p['bn1']), 0.0)
        h = jnp.maximum(bn(h @ p['w2'] + p['b2'], p['bn2']), 0.0)
        return h @ p['w3'] + p['b3']

    # --- Test 1: small batch, f32 (single grid step, exercises padding) --------------
    x_small = jax.random.normal(kx, (8, LAYERS[0]), jnp.float32)
    assert bool(jnp.isfinite(x_small).all())          # forward() input assert (host-side)
    y = jax.block_until_ready(normal_mlp_forward(x_small, folded))
    assert y.shape == (8, LAYERS[-1])
    assert bool(jnp.isfinite(y).all())                # forward() output assert (host-side)
    assert bool(jnp.allclose(y, ref(x_small, params), atol=1e-4, rtol=1e-4))

    # --- Test 2: multi-tile batch, f32 (exercises grid + padding + resident weights) --
    x_big = jax.random.normal(jax.random.fold_in(kx, 1), (5000, LAYERS[0]), jnp.float32)
    y_big = jax.block_until_ready(normal_mlp_forward(x_big, folded, tb=2048))
    assert y_big.shape == (5000, LAYERS[-1])
    assert bool(jnp.isfinite(y_big).all())
    assert bool(jnp.allclose(y_big, ref(x_big, params), atol=1e-4, rtol=1e-4))

    # --- Test 3: bf16 activation I/O (halves HBM traffic); weights stay f32 ----------
    x_bf16 = x_big.astype(jnp.bfloat16)
    y_bf16 = jax.block_until_ready(normal_mlp_forward(x_bf16, folded, tb=2048))
    assert y_bf16.dtype == jnp.bfloat16
    y_ref_bf16_in = ref(x_bf16.astype(jnp.float32), params)
    assert bool(jnp.allclose(y_bf16.astype(jnp.float32), y_ref_bf16_in,
                             atol=5e-2, rtol=5e-2))

    print("KERNEL_OK")
</pallas_src>

<mosaic_0001>
module attributes {stable_mosaic.version = 11 : i64} {
  func.func @normal_mlp_kernel(%arg0: i32, %arg1: memref<16x32xf32, #tpu.memory_space<vmem>>, %arg2: memref<32x64xf32, #tpu.memory_space<vmem>>, %arg3: memref<64x64xf32, #tpu.memory_space<vmem>>, %arg4: memref<64x16xf32, #tpu.memory_space<vmem>>, %arg5: memref<8x128xf32, #tpu.memory_space<vmem>>, %arg6: memref<16x16xf32, #tpu.memory_space<vmem>>) attributes {dimension_semantics = [#tpu.dimension_semantics<parallel>], iteration_bounds = array<i64: 1>, scalar_prefetch = 0 : i64, scratch_operands = 0 : i64, tpu.core_type = #tpu.core_type<tc>, window_params = [{transform_indices = @transform_0, window_bounds = array<i64: 16, 32>}, {pipeline_mode = #tpu.pipeline_mode<synchronous>, transform_indices = @transform_1, window_bounds = array<i64: 32, 64>}, {pipeline_mode = #tpu.pipeline_mode<synchronous>, transform_indices = @transform_2, window_bounds = array<i64: 64, 64>}, {pipeline_mode = #tpu.pipeline_mode<synchronous>, transform_indices = @transform_3, window_bounds = array<i64: 64, 16>}, {pipeline_mode = #tpu.pipeline_mode<synchronous>, transform_indices = @transform_4, window_bounds = array<i64: 8, 128>}, {transform_indices = @transform_5, window_bounds = array<i64: 16, 16>}]} {
    %c0 = arith.constant 0 : index
    %c0_0 = arith.constant 0 : index
    %0 = vector.load %arg1[%c0, %c0_0] : memref<16x32xf32, #tpu.memory_space<vmem>>, vector<16x32xf32>
    %c0_1 = arith.constant 0 : index
    %c0_2 = arith.constant 0 : index
    %1 = vector.load %arg5[%c0_1, %c0_2] : memref<8x128xf32, #tpu.memory_space<vmem>>, vector<8x128xf32>
    %2 = vector.extract_strided_slice %1 {offsets = [0, 0], sizes = [1, 32], strides = [1, 1]} : vector<8x128xf32> to vector<1x32xf32>
    %3 = vector.extract_strided_slice %1 {offsets = [1, 0], sizes = [1, 32], strides = [1, 1]} : vector<8x128xf32> to vector<1x32xf32>
    %4 = vector.extract_strided_slice %1 {offsets = [2, 0], sizes = [1, 64], strides = [1, 1]} : vector<8x128xf32> to vector<1x64xf32>
    %5 = vector.extract_strided_slice %1 {offsets = [3, 0], sizes = [1, 64], strides = [1, 1]} : vector<8x128xf32> to vector<1x64xf32>
    %6 = vector.extract_strided_slice %1 {offsets = [4, 0], sizes = [1, 16], strides = [1, 1]} : vector<8x128xf32> to vector<1x16xf32>
    %7 = vector.broadcast %2 : vector<1x32xf32> to vector<16x32xf32>
    %8 = arith.mulf %0, %7 : vector<16x32xf32>
    %9 = vector.broadcast %3 : vector<1x32xf32> to vector<16x32xf32>
    %10 = arith.addf %8, %9 : vector<16x32xf32>
    %cst = arith.constant 0.000000e+00 : f32
    %11 = vector.broadcast %cst : f32 to vector<16x32xf32>
    %12 = arith.maximumf %10, %11 : vector<16x32xf32>
    %c0_3 = arith.constant 0 : index
    %c0_4 = arith.constant 0 : index
    %13 = vector.load %arg2[%c0_3, %c0_4] : memref<32x64xf32, #tpu.memory_space<vmem>>, vector<32x64xf32>
    %cst_5 = arith.constant dense<0.000000e+00> : vector<16x64xf32>
    %14 = tpu.matmul %12, %13, %cst_5 {dimension_numbers = #tpu.dot_dimension_numbers<[1], [0], [0], [1], [0, 0, 1, 1], [], []>} : vector<16x32xf32>, vector<32x64xf32>, vector<16x64xf32> -> vector<16x64xf32>
    %15 = vector.broadcast %4 : vector<1x64xf32> to vector<16x64xf32>
    %16 = arith.addf %14, %15 : vector<16x64xf32>
    %cst_6 = arith.constant 0.000000e+00 : f32
    %17 = vector.broadcast %cst_6 : f32 to vector<16x64xf32>
    %18 = arith.maximumf %16, %17 : vector<16x64xf32>
    %c0_7 = arith.constant 0 : index
    %c0_8 = arith.constant 0 : index
    %19 = vector.load %arg3[%c0_7, %c0_8] : memref<64x64xf32, #tpu.memory_space<vmem>>, vector<64x64xf32>
    %cst_9 = arith.constant dense<0.000000e+00> : vector<16x64xf32>
    %20 = tpu.matmul %18, %19, %cst_9 {dimension_numbers = #tpu.dot_dimension_numbers<[1], [0], [0], [1], [0, 0, 1, 1], [], []>} : vector<16x64xf32>, vector<64x64xf32>, vector<16x64xf32> -> vector<16x64xf32>
    %21 = vector.broadcast %5 : vector<1x64xf32> to vector<16x64xf32>
    %22 = arith.addf %20, %21 : vector<16x64xf32>
    %cst_10 = arith.constant 0.000000e+00 : f32
    %23 = vector.broadcast %cst_10 : f32 to vector<16x64xf32>
    %24 = arith.maximumf %22, %23 : vector<16x64xf32>
    %c0_11 = arith.constant 0 : index
    %c0_12 = arith.constant 0 : index
    %25 = vector.load %arg4[%c0_11, %c0_12] : memref<64x16xf32, #tpu.memory_space<vmem>>, vector<64x16xf32>
    %cst_13 = arith.constant dense<0.000000e+00> : vector<16x16xf32>
    %26 = tpu.matmul %24, %25, %cst_13 {dimension_numbers = #tpu.dot_dimension_numbers<[1], [0], [0], [1], [0, 0, 1, 1], [], []>} : vector<16x64xf32>, vector<64x16xf32>, vector<16x16xf32> -> vector<16x16xf32>
    %27 = vector.broadcast %6 : vector<1x16xf32> to vector<16x16xf32>
    %28 = arith.addf %26, %27 : vector<16x16xf32>
    %c0_14 = arith.constant 0 : index
    %c0_15 = arith.constant 0 : index
    %29 = vector.load %arg6[%c0_14, %c0_15] : memref<16x16xf32, #tpu.memory_space<vmem>>, vector<16x16xf32>
    tpu.vector_store %arg6[%c0_14, %c0_15], %28 {strides = array<i32>} : memref<16x16xf32, #tpu.memory_space<vmem>>, vector<16x16xf32>,
    return
  }
  func.func @transform_0(%arg0: i32) -> (i32, i32) {
    %c0_i32 = arith.constant 0 : i32
    %c0_i32_0 = arith.constant 0 : i32
    return %arg0, %c0_i32 : i32, i32
  }
  func.func @transform_1(%arg0: i32) -> (i32, i32) {
    %c0_i32 = arith.constant 0 : i32
    %c0_i32_0 = arith.constant 0 : i32
    %c0_i32_1 = arith.constant 0 : i32
    return %c0_i32, %c0_i32_0 : i32, i32
  }
  func.func @transform_2(%arg0: i32) -> (i32, i32) {
    %c0_i32 = arith.constant 0 : i32
    %c0_i32_0 = arith.constant 0 : i32
    %c0_i32_1 = arith.constant 0 : i32
    return %c0_i32, %c0_i32_0 : i32, i32
  }
  func.func @transform_3(%arg0: i32) -> (i32, i32) {
    %c0_i32 = arith.constant 0 : i32
    %c0_i32_0 = arith.constant 0 : i32
    %c0_i32_1 = arith.constant 0 : i32
    return %c0_i32, %c0_i32_0 : i32, i32
  }
  func.func @transform_4(%arg0: i32) -> (i32, i32) {
    %c0_i32 = arith.constant 0 : i32
    %c0_i32_0 = arith.constant 0 : i32
    %c0_i32_1 = arith.constant 0 : i32
    return %c0_i32, %c0_i32_0 : i32, i32
  }
  func.func @transform_5(%arg0: i32) -> (i32, i32) {
    %c0_i32 = arith.constant 0 : i32
    %c0_i32_0 = arith.constant 0 : i32
    return %arg0, %c0_i32 : i32, i32
  }
}

</mosaic_0001>

<llo_original>
// kernel: tpu_custom_call.1
$region0: #{tpu_custom_call.1}
  #allocation0 [shape = 'u32[]', space=smem, size = 0x4, offset = 0x4, fixed_abs, tag = 'smem constant byte address 0x4 - core index']
  #allocation1 [shape = 'u32[72,128]{1,0:T(1,128)}', space=vmem, size = 0x9000, scoped, tag = 'internal scratch']
  %s0 = inlined_call_operand.vmem [shape: f32[16,32], index: 0, kind: input, shape index: {}]
  %s1 = inlined_call_operand.hbm [shape: f32[32,64], index: 1, kind: input, shape index: {}]
  %s2 = inlined_call_operand.vmem [shape: f32[64,64], index: 2, kind: input, shape index: {}]
  %s3 = inlined_call_operand.vmem [shape: f32[64,16], index: 3, kind: input, shape index: {}]
  %s4 = inlined_call_operand.hbm [shape: f32[8,128], index: 4, kind: input, shape index: {}]
  %s5 = inlined_call_operand.hbm [shape: f32[16,16], index: 5, kind: output, shape index: {}]
  %s6 = sld [smem:[#allocation0]]
  $region38: #{tpu_custom_call.1} parent=0
    _
  %s8 = ssub.s32 1, %s6
  %s9 = scalar_select 0, %s8, %s6
  $region1: #{tpu_custom_call.1} parent=0
    #allocation2 [shape = 'u8[16384]{0}', space=vmem, size = 0x4000, scoped, tag = 'input window, operand 1, single buffered']
    #allocation3 [shape = 's32[1]{0}', space=sflag, size = 0x4, scoped, tag = 'scoped memory for tpu_custom_call.1']
    #allocation4 [shape = 's32[1]{0}', space=sflag, size = 0x4, scoped, tag = 'scoped memory for tpu_custom_call.1']
    #allocation5 [shape = 'u8[4096]{0}', space=vmem, size = 0x1000, scoped, tag = 'input window, operand 4, single buffered']
    #allocation6 [shape = 's32[1]{0}', space=sflag, size = 0x4, scoped, tag = 'scoped memory for tpu_custom_call.1']
    #allocation7 [shape = 'u8[8192]{0}', space=vmem, size = 0x2000, scoped, tag = 'output window, operand 0, single buffered']
    %10 = vsyncpa [#allocation3], 0
    %11 = vsyncpa [#allocation6], 0
    %12 = vsyncpa [#allocation4], 0
    // Predicated region
    $region2: #{tpu_custom_call.1} parent=1 // pred_check
      _
    $region3: #{tpu_custom_call.1} parent=1 // pred_check_branch
      %14 = sbr.rel (0) target = $region5
    $region4: #{tpu_custom_call.1} parent=1 // pred_region
      _
    $region5: #{tpu_custom_call.1} parent=1 // pred_fallthru
      _
    // Predicated region
    $region6: #{tpu_custom_call.1} parent=1 // pred_check
      _
    $region7: #{tpu_custom_call.1} parent=1 // pred_check_branch
      %16 = sbr.rel (0) target = $region9
    $region8: #{tpu_custom_call.1} parent=1 // pred_region
      %18 = vsyncadd [#allocation3], 0
      %s19 = sshll.u32 %s1, 4
      %s20 = int_to_ptr.hbm [resolvable:$true] %s19
      %s21 = sshll.u32 [#allocation2], 4
      %s22 = int_to_ptr.vmem [resolvable:$true] %s21
      %27 = dma.hbm_to_vmem [thread:$0]  %s20, 512, %s22, [#allocation3], 128, 128, 8
    $region9: #{tpu_custom_call.1} parent=1 // pred_fallthru
      _
    // Predicated region
    $region10: #{tpu_custom_call.1} parent=1 // pred_check
      _
    $region11: #{tpu_custom_call.1} parent=1 // pred_check_branch
      %29 = sbr.rel (0) target = $region13
    $region12: #{tpu_custom_call.1} parent=1 // pred_region
      _
    $region13: #{tpu_custom_call.1} parent=1 // pred_fallthru
      _
    // Predicated region
    $region14: #{tpu_custom_call.1} parent=1 // pred_check
      _
    $region15: #{tpu_custom_call.1} parent=1 // pred_check_branch
      %31 = sbr.rel (0) target = $region17
    $region16: #{tpu_custom_call.1} parent=1 // pred_region
      _
    $region17: #{tpu_custom_call.1} parent=1 // pred_fallthru
      _
    // Predicated region
    $region18: #{tpu_custom_call.1} parent=1 // pred_check
      _
    $region19: #{tpu_custom_call.1} parent=1 // pred_check_branch
      %33 = sbr.rel (0) target = $region21
    $region20: #{tpu_custom_call.1} parent=1 // pred_region
      %35 = vsyncadd [#allocation6], 0
      %s37 = sshll.u32 %s4, 4
      %s38 = int_to_ptr.hbm [resolvable:$true] %s37
      %s39 = sshll.u32 [#allocation5], 4
      %s40 = int_to_ptr.vmem [resolvable:$true] %s39
      %42 = dma.hbm_to_vmem [thread:$0]  %s38, 128, %s40, [#allocation6]
    $region21: #{tpu_custom_call.1} parent=1 // pred_fallthru
      _
    // Predicated region
    $region22: #{tpu_custom_call.1} parent=1 // pred_check
      _
    $region23: #{tpu_custom_call.1} parent=1 // pred_check_branch
      %44 = sbr.rel (0) target = $region25
    $region24: #{tpu_custom_call.1} parent=1 // pred_region
      %46 = dma.done [#allocation3], 512
    $region25: #{tpu_custom_call.1} parent=1 // pred_fallthru
      _
    // Predicated region
    $region26: #{tpu_custom_call.1} parent=1 // pred_check
      _
    $region27: #{tpu_custom_call.1} parent=1 // pred_check_branch
      %48 = sbr.rel (0) target = $region29
    $region28: #{tpu_custom_call.1} parent=1 // pred_region
      %50 = dma.done [#allocation6], 128
    $region29: #{tpu_custom_call.1} parent=1 // pred_fallthru
      _
    %v51 = vld [vmem:[%s0] sm:$0xff]
    %v52 = vld [vmem:[%s0 + $0x8] sm:$0xff]
    %v53 = vld [vmem:[#allocation5] sm:$0xff]
    %v54 = vperm.slane %v53, 0
    %v55 = vmul.f32 %v51, %v54
    %v56 = vmul.f32 %v52, %v54
    %v57 = vperm.slane %v53, 1
    %v58 = vadd.f32 %v55, %v57
    %v59 = vadd.f32 %v56, %v57
    %v60 = vmax.f32 %v58, 0.0
    %v61 = vmax.f32 %v59, 0.0
    %v62 = vld [vmem:[#allocation2] sm:$0xff]
    %v63 = vld [vmem:[#allocation2 + $0x8] sm:$0xff]
    %v64 = vld [vmem:[#allocation2 + $0x10] sm:$0xff]
    %v65 = vld [vmem:[#allocation2 + $0x18] sm:$0xff]
    %v66 = vperm.slane %v53, 2
    %vm67 = vcmask 261120
    %v69 = vsel %vm67, %v60, 0
    %v72 = vsel %vm67, %v61, 0
    %74 = vmatpush.msra.mxu0 0.0
    %75 = vmatpush.msra.mxu0 0.0
    %76 = vmatpush.msra.mxu0 0.0
    %77 = vmatpush.msra.mxu0 0.0
    %78 = vmatpush.msra.mxu0 0.0
    %79 = vmatpush.msra.mxu0 0.0
    %80 = vmatpush.msra.mxu0 0.0
    %81 = vmatpush.msra.mxu0 0.0
    %82 = vmatpush.msra.mxu0 0.0
    %83 = vmatpush.msra.mxu0 0.0
    %84 = vmatpush.msra.mxu0 0.0
    %85 = vmatpush.msra.mxu0 0.0
    %86 = vmatpush.msra.mxu0 %v65
    %87 = vmatpush.msra.mxu0 %v64
    %88 = vmatpush.msra.mxu0 %v63
    %89 = vmatpush.msra.mxu0 %v62
    %90 = vmatmul.f32.gmra.mxu0 %v69
    %v91 = vpop.f32.mrf.mxu0
    %v92 = vadd.f32 %v66, %v91
    %93 = vmatmul.f32.gmra.mxu0 %v72
    %v94 = vpop.f32.mrf.mxu0
    %v95 = vadd.f32 %v66, %v94
    %96 = vdwg.mxu0
    %v97 = vmax.f32 %v92, 0.0
    %v98 = vmax.f32 %v95, 0.0
    %v99 = vld [vmem:[%s2] sm:$0xff]
    %v100 = vld [vmem:[%s2 + $0x8] sm:$0xff]
    %v101 = vld [vmem:[%s2 + $0x10] sm:$0xff]
    %v102 = vld [vmem:[%s2 + $0x18] sm:$0xff]
    %v103 = vld [vmem:[%s2 + $0x20] sm:$0xff]
    %v104 = vld [vmem:[%s2 + $0x28] sm:$0xff]
    %v105 = vld [vmem:[%s2 + $0x30] sm:$0xff]
    %v106 = vld [vmem:[%s2 + $0x38] sm:$0xff]
    %v107 = vperm.slane %v53, 3
    %vm108 = vcmask 523264
    %v110 = vsel %vm108, %v97, 0
    %v113 = vsel %vm108, %v98, 0
    %115 = vmatpush.msra.mxu0 0.0
    %116 = vmatpush.msra.mxu0 0.0
    %117 = vmatpush.msra.mxu0 0.0
    %118 = vmatpush.msra.mxu0 0.0
    %119 = vmatpush.msra.mxu0 0.0
    %120 = vmatpush.msra.mxu0 0.0
    %121 = vmatpush.msra.mxu0 0.0
    %122 = vmatpush.msra.mxu0 0.0
    %123 = vmatpush.msra.mxu0 %v106
    %124 = vmatpush.msra.mxu0 %v105
    %125 = vmatpush.msra.mxu0 %v104
    %126 = vmatpush.msra.mxu0 %v103
    %127 = vmatpush.msra.mxu0 %v102
    %128 = vmatpush.msra.mxu0 %v101
    %129 = vmatpush.msra.mxu0 %v100
    %130 = vmatpush.msra.mxu0 %v99
    %131 = vmatmul.f32.gmra.mxu0 %v110
    %v132 = vpop.f32.mrf.mxu0
    %v133 = vadd.f32 %v107, %v132
    %134 = vmatmul.f32.gmra.mxu0 %v113
    %v135 = vpop.f32.mrf.mxu0
    %v136 = vadd.f32 %v107, %v135
    %137 = vdwg.mxu0
    %v138 = vmax.f32 %v133, 0.0
    %v139 = vmax.f32 %v136, 0.0
    %v140 = vld [vmem:[%s3] sm:$0xff]
    %v141 = vld [vmem:[%s3 + $0x8] sm:$0xff]
    %v142 = vld [vmem:[%s3 + $0x10] sm:$0xff]
    %v143 = vld [vmem:[%s3 + $0x18] sm:$0xff]
    %v144 = vld [vmem:[%s3 + $0x20] sm:$0xff]
    %v145 = vld [vmem:[%s3 + $0x28] sm:$0xff]
    %v146 = vld [vmem:[%s3 + $0x30] sm:$0xff]
    %v147 = vld [vmem:[%s3 + $0x38] sm:$0xff]
    %v148 = vperm.slane %v53, 4
    %v150 = vsel %vm108, %v138, 0
    %v153 = vsel %vm108, %v139, 0
    %155 = vmatpush.msra.mxu0 0.0
    %156 = vmatpush.msra.mxu0 0.0
    %157 = vmatpush.msra.mxu0 0.0
    %158 = vmatpush.msra.mxu0 0.0
    %159 = vmatpush.msra.mxu0 0.0
    %160 = vmatpush.msra.mxu0 0.0
    %161 = vmatpush.msra.mxu0 0.0
    %162 = vmatpush.msra.mxu0 0.0
    %163 = vmatpush.msra.mxu0 %v147
    %164 = vmatpush.msra.mxu0 %v146
    %165 = vmatpush.msra.mxu0 %v145
    %166 = vmatpush.msra.mxu0 %v144
    %167 = vmatpush.msra.mxu0 %v143
    %168 = vmatpush.msra.mxu0 %v142
    %169 = vmatpush.msra.mxu0 %v141
    %170 = vmatpush.msra.mxu0 %v140
    %171 = vmatmul.f32.gmra.mxu0 %v150
    %v172 = vpop.f32.mrf.mxu0
    %v173 = vadd.f32 %v148, %v172
    %174 = vmatmul.f32.gmra.mxu0 %v153
    %v175 = vpop.f32.mrf.mxu0
    %v176 = vadd.f32 %v148, %v175
    %177 = vdwg.mxu0
    %vm178 = vcmask 130048
    %179 = vst.msk [vmem:[#allocation7] sm:$0xff] %vm178, %v173
    %180 = vst.msk [vmem:[#allocation7 + $0x8] sm:$0xff] %vm178, %v176
    // Predicated region
    $region30: #{tpu_custom_call.1} parent=1 // pred_check
      _
    $region31: #{tpu_custom_call.1} parent=1 // pred_check_branch
      %182 = sbr.rel (0) target = $region33
    $region32: #{tpu_custom_call.1} parent=1 // pred_region
      %184 = vsyncadd [#allocation4], 0
      %s185 = sshll.u32 [#allocation7], 4
      %s186 = int_to_ptr.vmem [resolvable:$true] %s185
      %s187 = sshll.u32 %s5, 4
      %s188 = int_to_ptr.hbm [resolvable:$true] %s187
      %193 = dma.vmem_to_hbm [thread:$0]  %s186, 256, %s188, [#allocation4], 128, 128, 8
    $region33: #{tpu_custom_call.1} parent=1 // pred_fallthru
      _
    // Predicated region
    $region34: #{tpu_custom_call.1} parent=1 // pred_check
      _
    $region35: #{tpu_custom_call.1} parent=1 // pred_check_branch
      %195 = sbr.rel (0) target = $region37
    $region36: #{tpu_custom_call.1} parent=1 // pred_region
      %197 = dma.done [#allocation4], 256
    $region37: #{tpu_custom_call.1} parent=1 // pred_fallthru
      _
    %198 = vsyncpa [#allocation3], 1
    %199 = vsyncpa [#allocation6], 1
    %200 = vsyncpa [#allocation4], 1

</llo_original>
